<compile_context>
chip_gen: v5e
topology: v5e:2x2
jax: 0.10.0
libtpu: 0.0.40
codegen_flags: <defaults>
</compile_context>

<pallas_src>
import jax
import jax.numpy as jnp
from jax.experimental import pallas as pl
from jax.experimental.pallas import tpu as pltpu


def _round_up(x, m):
    return ((x + m - 1) // m) * m


def _embed_gather_kernel(idx_ref, emb_ref, out_ref):
    # idx_ref : (1, TB) int32 token ids for this block (lane-dense)
    # emb_ref : (num_chars, hidden) embedding table, resident in VMEM
    # out_ref : (TB, hidden) gathered rows
    idx_row = idx_ref[...]                                  # (1, TB)
    tb = idx_row.shape[1]
    num_chars = emb_ref.shape[0]
    # Transposed one-hot: vocab ids on sublanes, tokens on lanes, so the
    # (1, TB) index row sublane-broadcasts for free (VPU compare only).
    iota_v = jax.lax.broadcasted_iota(jnp.int32, (num_chars, tb), 0)
    one_hot_t = (iota_v == idx_row).astype(emb_ref.dtype)   # (V, TB)
    # Contract the vocab axis of both operands on the MXU -> (TB, hidden).
    # HIGHEST precision so f32 embedding values survive the MXU unrounded.
    out = jax.lax.dot_general(
        one_hot_t, emb_ref[...],
        dimension_numbers=(((0,), (0,)), ((), ())),
        preferred_element_type=jnp.float32,
        precision=jax.lax.Precision.HIGHEST,
    )
    out_ref[...] = out.astype(out_ref.dtype)


def _choose_token_block(n_tok, max_block=1024):
    """Sublane-aligned token block; prefer >=2 blocks when work allows."""
    tb = min(max_block, _round_up(n_tok, 8))
    if tb >= 16 and pl.cdiv(n_tok, tb) < 2:
        # Split a single-block launch in two so both v7x TensorCores get work.
        tb = max(8, _round_up(pl.cdiv(n_tok, 2), 8))
    return tb


def embedding_lookup(indices, emb_weight, *, max_token_block=1024):
    """out[...] = emb_weight[indices[...], :] via a Pallas TPU kernel."""
    orig_shape = indices.shape
    flat_idx = indices.reshape(-1).astype(jnp.int32)
    n_tok = flat_idx.shape[0]
    assert n_tok > 0, "embedding_lookup requires at least one index"
    num_chars, hidden = emb_weight.shape
    dtype_bytes = jnp.dtype(emb_weight.dtype).itemsize

    tb = _choose_token_block(n_tok, max_token_block)
    n_blocks = pl.cdiv(n_tok, tb)
    n_pad = n_blocks * tb
    if n_pad != n_tok:
        flat_idx = jnp.pad(flat_idx, (0, n_pad - n_tok))    # row 0 is valid
    # Lane-dense index layout: one contiguous TB-wide row per grid step.
    idx_3d = flat_idx.reshape(n_blocks, 1, tb)

    # Scoped-VMEM budget: single-buffered table + double-buffered out / idx
    # blocks (tile-padded layouts) + slack for compiler-internal scratch.
    table_vmem = _round_up(num_chars, 8) * _round_up(hidden, 128) * dtype_bytes
    out_vmem = 2 * _round_up(tb, 8) * _round_up(hidden, 128) * dtype_bytes
    idx_vmem = 2 * 8 * _round_up(tb, 128) * 4
    vmem_limit = int(min(max(table_vmem + out_vmem + idx_vmem + (8 << 20),
                             32 << 20), 64 << 20))
    # TODO(synk): for tables that do not fit VMEM (very large vocab, esp.
    # v7x's 64 MiB/TC), add a hidden-tiled second grid axis or a DMA
    # row-gather path instead of the resident-table one-hot matmul.

    cost = pl.CostEstimate(
        flops=2 * n_pad * num_chars * hidden,
        transcendentals=0,
        bytes_accessed=(num_chars * hidden * dtype_bytes     # table read once
                        + n_pad * hidden * dtype_bytes       # output writeback
                        + n_pad * 4),                        # indices
    )

    out_flat = pl.pallas_call(
        _embed_gather_kernel,
        out_shape=jax.ShapeDtypeStruct((n_pad, hidden), emb_weight.dtype),
        grid=(n_blocks,),
        in_specs=[
            # Lane-dense index row for this block; leading dim squeezed away.
            pl.BlockSpec((None, 1, tb), lambda i: (i, 0, 0)),
            # Whole table resident in VMEM; grid-invariant -> single buffer.
            pl.BlockSpec((num_chars, hidden), lambda i: (0, 0),
                         pipeline_mode=pl.Buffered(1)),
        ],
        out_specs=pl.BlockSpec((tb, hidden), lambda i: (i, 0)),
        compiler_params=pltpu.CompilerParams(
            dimension_semantics=("parallel",),
            vmem_limit_bytes=vmem_limit,
        ),
        cost_estimate=cost,
    )(idx_3d, emb_weight)

    out = out_flat[:n_tok] if n_pad != n_tok else out_flat
    return out.reshape(orig_shape + (hidden,))


class BigLMLinearClassPallas:
    """JAX/Pallas port of the PyTorch BigLMLinearClass (forward only)."""

    def __init__(self, num_chars, hidden_size, key):
        k_emb, k_lin = jax.random.split(key)
        # nn.Embedding default init: N(0, 1). Stored in its final layout, so
        # forward never pads / repacks the table per call.
        self.embedding_weight = jax.random.normal(
            k_emb, (num_chars, hidden_size), dtype=jnp.float32)
        # torch.rand -> U[0, 1); unused in forward, kept for parity.
        self.lin_out_layer = jax.random.uniform(
            k_lin, (num_chars, hidden_size), dtype=jnp.float32)

    def forward(self, indices):
        return embedding_lookup(indices, self.embedding_weight)


if __name__ == "__main__":
    key = jax.random.PRNGKey(0)
    k_model, k_idx = jax.random.split(key)

    num_chars = 64
    hidden_size = 32          # deliberately NOT a multiple of 128
    batch, seq = 2, 8

    model = BigLMLinearClassPallas(num_chars, hidden_size, k_model)
    indices = jax.random.randint(k_idx, (batch, seq), 0, num_chars,
                                 dtype=jnp.int32)

    out = model.forward(indices)
    out = jax.block_until_ready(out)

    # Reference check against plain JAX gather.
    ref = jnp.take(model.embedding_weight, indices, axis=0)
    assert out.shape == (batch, seq, hidden_size), out.shape
    assert out.dtype == model.embedding_weight.dtype
    assert jnp.allclose(out, ref), "mismatch vs reference gather"

    print("KERNEL_OK")
</pallas_src>

<mosaic_0001>
module attributes {stable_mosaic.version = 11 : i64} {
  func.func @_embed_gather_kernel(%arg0: i32, %arg1: memref<1x1x8xi32, #tpu.memory_space<vmem>>, %arg2: memref<64x32xf32, #tpu.memory_space<vmem>>, %arg3: memref<8x32xf32, #tpu.memory_space<vmem>>) attributes {dimension_semantics = [#tpu.dimension_semantics<parallel>], iteration_bounds = array<i64: 2>, scalar_prefetch = 0 : i64, scratch_operands = 0 : i64, tpu.core_type = #tpu.core_type<tc>, window_params = [{transform_indices = @transform_0, window_bounds = array<i64: 1, 1, 8>}, {pipeline_mode = #tpu.pipeline_mode<synchronous>, transform_indices = @transform_1, window_bounds = array<i64: 64, 32>}, {transform_indices = @transform_2, window_bounds = array<i64: 8, 32>}]} {
    %c0 = arith.constant 0 : index
    %c0_0 = arith.constant 0 : index
    %c0_1 = arith.constant 0 : index
    %0 = vector.load %arg1[%c0, %c0_0, %c0_1] : memref<1x1x8xi32, #tpu.memory_space<vmem>>, vector<1x1x8xi32>
    %1 = vector.shape_cast %0 : vector<1x1x8xi32> to vector<1x8xi32>
    %2 = tpu.iota {dimensions = array<i32: 0>} : vector<64x8xi32>
    %3 = vector.broadcast %1 : vector<1x8xi32> to vector<64x8xi32>
    %4 = arith.cmpi eq, %2, %3 : vector<64x8xi32>
    %5 = arith.extui %4 : vector<64x8xi1> to vector<64x8xi32>
    %6 = arith.sitofp %5 : vector<64x8xi32> to vector<64x8xf32>
    %c0_2 = arith.constant 0 : index
    %c0_3 = arith.constant 0 : index
    %7 = vector.load %arg2[%c0_2, %c0_3] : memref<64x32xf32, #tpu.memory_space<vmem>>, vector<64x32xf32>
    %cst = arith.constant dense<0.000000e+00> : vector<8x32xf32>
    %8 = tpu.matmul %6, %7, %cst {dimension_numbers = #tpu.dot_dimension_numbers<[0], [0], [1], [1], [0, 1, 1, 1], [], []>, precision = #tpu.contract_precision<fp32>} : vector<64x8xf32>, vector<64x32xf32>, vector<8x32xf32> -> vector<8x32xf32>
    %c0_4 = arith.constant 0 : index
    %c0_5 = arith.constant 0 : index
    %9 = vector.load %arg3[%c0_4, %c0_5] : memref<8x32xf32, #tpu.memory_space<vmem>>, vector<8x32xf32>
    tpu.vector_store %arg3[%c0_4, %c0_5], %8 {strides = array<i32>} : memref<8x32xf32, #tpu.memory_space<vmem>>, vector<8x32xf32>,
    return
  }
  func.func @transform_0(%arg0: i32) -> (i32, i32, i32) {
    %c0_i32 = arith.constant 0 : i32
    %c0_i32_0 = arith.constant 0 : i32
    %c0_i32_1 = arith.constant 0 : i32
    return %arg0, %c0_i32, %c0_i32_0 : i32, i32, i32
  }
  func.func @transform_1(%arg0: i32) -> (i32, i32) {
    %c0_i32 = arith.constant 0 : i32
    %c0_i32_0 = arith.constant 0 : i32
    %c0_i32_1 = arith.constant 0 : i32
    return %c0_i32, %c0_i32_0 : i32, i32
  }
  func.func @transform_2(%arg0: i32) -> (i32, i32) {
    %c0_i32 = arith.constant 0 : i32
    %c0_i32_0 = arith.constant 0 : i32
    return %arg0, %c0_i32 : i32, i32
  }
}

</mosaic_0001>

<llo_original>
// kernel: tpu_custom_call.1
$region0: #{tpu_custom_call.1}
  #allocation0 [shape = 'u32[]', space=smem, size = 0x4, offset = 0x4, fixed_abs, tag = 'smem constant byte address 0x4 - core index']
  #allocation1 [shape = 'u32[72,128]{1,0:T(1,128)}', space=vmem, size = 0x9000, scoped, tag = 'internal scratch']
  %s0 = inlined_call_operand.vmem [shape: s32[2,1,8], index: 0, kind: input, shape index: {}]
  %s1 = inlined_call_operand.vmem [shape: f32[64,32], index: 1, kind: input, shape index: {}]
  %s2 = inlined_call_operand.hbm [shape: f32[16,32], index: 2, kind: output, shape index: {}]
  %s3 = sld [smem:[#allocation0]]
  $region41: #{tpu_custom_call.1} parent=0
    _
  %s5 = ssub.s32 1, %s3
  %s6 = scalar_select 0, %s5, %s3
  $region1: #{tpu_custom_call.1} parent=0
    #allocation2 [shape = 'u8[8192]{0}', space=vmem, size = 0x2000, scoped, tag = 'output window, operand 0']
    #allocation3 [shape = 's32[2]{0}', space=sflag, size = 0x8, scoped, tag = 'scoped memory for tpu_custom_call.1']
    %7 = vsyncpa [#allocation3], 0
    %s8 = scalar_lea.sflag [#allocation3], 1
    %9 = vsyncpa %s8, 0
    loop: start=0, step=1, limit=4
    $region2: #{tpu_custom_call.1} parent=1 // loop_pre_header
      _
    $region3: #{tpu_custom_call.1} parent=1 // loop_header
      %s11 = sphi 0, %s15
      %p12 = scmp.ge.s32.totalorder %s11, 4
      %s21 = sphi 0, %s23
      %s24 = sphi 0, %s21
      %s25 = sphi 0, %s24
      %s41 = sphi 0, %s25
      %s45 = sphi 0, %s45
      %s47 = sphi 0, %s45
      %s48 = sphi 0, %s47
      %s62 = sphi 0, %s48
      %s68 = sphi 0, %s70
      %s71 = sphi 0, %s68
      %s72 = sphi 0, %s71
      %s88 = sphi 0, %s72
    $region4: #{tpu_custom_call.1} parent=1 // loop_header_branch
      %14 = sbr.rel (%p12) target = $region8
    $region5: #{tpu_custom_call.1} parent=1 // loop_body
      %s16 = ssub.s32 %s11, 1
      %s17 = ssub.s32 %s11, 2
      %s18 = sadd.s32 %s11, 1
      %s19 = ssub.s32 %s11, %s18
      %p20 = scmp.eq.s32.totalorder %s19, 0
      %s22 = sadd.s32 %s21, 1
      %s23 = scalar_select %p20, %s21, %s22
      %p26 = pneg %p20
      %p27 = scmp.eq.s32.totalorder %s11, 1
      %p28 = por %p26, %p27
      %p29 = scmp.ne.s32.totalorder %s21, %s24
      %p30 = scmp.eq.s32.totalorder %s11, 0
      %p31 = por %p29, %p30
      %p32 = scmp.ne.s32.totalorder %s21, %s24
      %p33 = scmp.eq.s32.totalorder %s16, 1
      %p34 = por %p32, %p33
      %p35 = scmp.ne.s32.totalorder %s24, %s25
      %p36 = scmp.eq.s32.totalorder %s16, 0
      %p37 = por %p35, %p36
      %p38 = scmp.ne.s32.totalorder %s24, %s25
      %p39 = scmp.eq.s32.totalorder %s17, 1
      %p40 = por %p38, %p39
      %p42 = scmp.ne.s32.totalorder %s25, %s41
      %p43 = scmp.eq.s32.totalorder %s17, 0
      %p44 = por %p42, %p43
      %s46 = sadd.s32 %s45, 1
      %p49 = scmp.eq.s32.totalorder %s11, 1
      %p50 = scmp.ne.s32.totalorder %s45, %s47
      %p51 = scmp.eq.s32.totalorder %s11, 0
      %p52 = por %p50, %p51
      %p53 = scmp.ne.s32.totalorder %s45, %s47
      %p54 = scmp.eq.s32.totalorder %s16, 1
      %p55 = por %p53, %p54
      %p56 = scmp.ne.s32.totalorder %s47, %s48
      %p57 = scmp.eq.s32.totalorder %s16, 0
      %p58 = por %p56, %p57
      %p59 = scmp.ne.s32.totalorder %s47, %s48
      %p60 = scmp.eq.s32.totalorder %s17, 1
      %p61 = por %p59, %p60
      %p63 = scmp.ne.s32.totalorder %s48, %s62
      %p64 = scmp.eq.s32.totalorder %s17, 0
      %p65 = por %p63, %p64
      %s66 = ssub.s32 %s11, %s18
      %p67 = scmp.eq.s32.totalorder %s66, 0
      %s69 = sadd.s32 %s68, 1
      %s70 = scalar_select %p67, %s68, %s69
      %p73 = pneg %p67
      %p74 = scmp.eq.s32.totalorder %s11, 1
      %p75 = por %p73, %p74
      %p76 = scmp.ne.s32.totalorder %s68, %s71
      %p77 = scmp.eq.s32.totalorder %s11, 0
      %p78 = por %p76, %p77
      %p79 = scmp.ne.s32.totalorder %s68, %s71
      %p80 = scmp.eq.s32.totalorder %s16, 1
      %p81 = por %p79, %p80
      %p82 = scmp.ne.s32.totalorder %s71, %s72
      %p83 = scmp.eq.s32.totalorder %s16, 0
      %p84 = por %p82, %p83
      %p85 = scmp.ne.s32.totalorder %s71, %s72
      %p86 = scmp.eq.s32.totalorder %s17, 1
      %p87 = por %p85, %p86
      %p89 = scmp.ne.s32.totalorder %s72, %s88
      %p90 = scmp.eq.s32.totalorder %s17, 0
      %p91 = por %p89, %p90
      %p92 = scmp.le.s32.totalorder 1, %s11
      %p93 = scmp.lt.s32.totalorder %s11, 3
      %p94 = pnand %p92, %p93
      %p95 = pneg %p94
      // Predicated region
      $region9: #{tpu_custom_call.1} parent=5 // pred_check
        _
      $region10: #{tpu_custom_call.1} parent=5 // pred_check_branch
        %97 = sbr.rel (%p94) target = $region12
      $region11: #{tpu_custom_call.1} parent=5 // pred_region
        %s98 = ssub.s32 %s11, 1
        // Predicated region
        $region13: #{tpu_custom_call.1} parent=11 // pred_check
          %p99 = pneg %p58
        $region14: #{tpu_custom_call.1} parent=11 // pred_check_branch
          %101 = sbr.rel (%p99) target = $region16
        $region15: #{tpu_custom_call.1} parent=11 // pred_region
          _
        $region16: #{tpu_custom_call.1} parent=11 // pred_fallthru
          _
      $region12: #{tpu_custom_call.1} parent=5 // pred_fallthru
        _
      %p102 = scmp.lt.s32.totalorder %s11, 2
      // Predicated region
      $region17: #{tpu_custom_call.1} parent=5 // pred_check
        %p103 = pneg %p102
      $region18: #{tpu_custom_call.1} parent=5 // pred_check_branch
        %105 = sbr.rel (%p103) target = $region20
      $region19: #{tpu_custom_call.1} parent=5 // pred_region
        // Predicated region
        $region21: #{tpu_custom_call.1} parent=19 // pred_check
          %p106 = pneg %p31
        $region22: #{tpu_custom_call.1} parent=19 // pred_check_branch
          %108 = sbr.rel (%p106) target = $region24
        $region23: #{tpu_custom_call.1} parent=19 // pred_region
          %p109 = scmp.lt.s32.totalorder %s11, 1
          %s110 = scalar_select %p109, %s11, 1
          %s111 = scalar_lea.vmem %s0, %s110
        $region24: #{tpu_custom_call.1} parent=19 // pred_fallthru
          _
      $region20: #{tpu_custom_call.1} parent=5 // pred_fallthru
        _
      %p112 = scmp.le.s32.totalorder 1, %s11
      %p113 = scmp.lt.s32.totalorder %s11, 3
      %p114 = pnand %p112, %p113
      %p115 = pneg %p114
      // Predicated region
      $region25: #{tpu_custom_call.1} parent=5 // pred_check
        _
      $region26: #{tpu_custom_call.1} parent=5 // pred_check_branch
        %117 = sbr.rel (%p114) target = $region28
      $region27: #{tpu_custom_call.1} parent=5 // pred_region
        %s118 = ssub.s32 %s11, 1
        %p119 = scmp.lt.s32.totalorder %s16, 1
        %s120 = scalar_select %p119, %s16, 1
        %s121 = scalar_lea.vmem %s0, %s120
        %p122 = pneg %p37
        %p123 = pneg %p34
        %p124 = pneg %p58
        %p125 = pneg %p55
        %p126 = pneg %p84
        %p127 = pneg %p81
        %s128 = sand.u32 %s71, 1
        %s129 = scalar_lea.sflag [#allocation3], %s128
        %s130 = sand.u32 %s71, 1
        %s131 = smul.addr %s130, 8
        %s132 = scalar_lea.vmem [#allocation2], %s131
        %p133 = scmp.lt.s32.totalorder %s16, 1
        %s134 = scalar_select %p133, %s16, 1
        %s135 = scalar_lea.vmem %s0, %s134
        %v136 = vld [vmem:[%s135] sm:$0x1]
        %v137 = vlaneseq
        %v138 = vshrl.u32 %v137, 7
        %v139 = vadd.s32 %v138, 8
        %v140 = vadd.s32 %v138, 16
        %v141 = vadd.s32 %v138, 24
        %v142 = vadd.s32 %v138, 32
        %v143 = vadd.s32 %v138, 40
        %v144 = vadd.s32 %v138, 48
        %v145 = vadd.s32 %v138, 56
        %v146 = vperm.slane %v136, 0
        %vm147 = vcmp.eq.s32.totalorder %v138, %v146
        %vm148 = vcmp.eq.s32.totalorder %v139, %v146
        %vm149 = vcmp.eq.s32.totalorder %v140, %v146
        %vm150 = vcmp.eq.s32.totalorder %v141, %v146
        %vm151 = vcmp.eq.s32.totalorder %v142, %v146
        %vm152 = vcmp.eq.s32.totalorder %v143, %v146
        %vm153 = vcmp.eq.s32.totalorder %v144, %v146
        %vm154 = vcmp.eq.s32.totalorder %v145, %v146
        %v155 = vsel %vm147, 1, 0
        %v156 = vsel %vm148, 1, 0
        %v157 = vsel %vm149, 1, 0
        %v158 = vsel %vm150, 1, 0
        %v159 = vsel %vm151, 1, 0
        %v160 = vsel %vm152, 1, 0
        %v161 = vsel %vm153, 1, 0
        %v162 = vsel %vm154, 1, 0
        %v163 = vcvt.s32.f32 %v155
        %v164 = vcvt.s32.f32 %v156
        %v165 = vcvt.s32.f32 %v157
        %v166 = vcvt.s32.f32 %v158
        %v167 = vcvt.s32.f32 %v159
        %v168 = vcvt.s32.f32 %v160
        %v169 = vcvt.s32.f32 %v161
        %v170 = vcvt.s32.f32 %v162
        %v171 = vld [vmem:[%s1] sm:$0xff]
        %v172 = vld [vmem:[%s1 + $0x8] sm:$0xff]
        %v173 = vld [vmem:[%s1 + $0x10] sm:$0xff]
        %v174 = vld [vmem:[%s1 + $0x18] sm:$0xff]
        %v175 = vld [vmem:[%s1 + $0x20] sm:$0xff]
        %v176 = vld [vmem:[%s1 + $0x28] sm:$0xff]
        %v177 = vld [vmem:[%s1 + $0x30] sm:$0xff]
        %v178 = vld [vmem:[%s1 + $0x38] sm:$0xff]
        %179 = vxpose.xlu0.b32.start [1/16] %v163, 128
        %180 = vxpose.xlu0.b32.cont [2/16] %v164, 128
        %181 = vxpose.xlu0.b32.cont [3/16] %v165, 128
        %182 = vxpose.xlu0.b32.cont [4/16] %v166, 128
        %183 = vxpose.xlu0.b32.cont [5/16] %v167, 128
        %184 = vxpose.xlu0.b32.cont [6/16] %v168, 128
        %185 = vxpose.xlu0.b32.cont [7/16] %v169, 128
        %186 = vxpose.xlu0.b32.cont [8/16] %v170, 128
        %187 = vxpose.xlu0.b32.cont [9/16] 0.0, 128
        %188 = vxpose.xlu0.b32.cont [10/16] 0.0, 128
        %189 = vxpose.xlu0.b32.cont [11/16] 0.0, 128
        %190 = vxpose.xlu0.b32.cont [12/16] 0.0, 128
        %191 = vxpose.xlu0.b32.cont [13/16] 0.0, 128
        %192 = vxpose.xlu0.b32.cont [14/16] 0.0, 128
        %193 = vxpose.xlu0.b32.cont [15/16] 0.0, 128
        %194 = vxpose.xlu0.b32.end [16/16] 0.0, 128
        %v195 = vpop.trf.xlu0
        %v196 = vpop.trf.xlu0
        %v197 = vpop.trf.xlu0
        %v198 = vpop.trf.xlu0
        %v199 = vpop.trf.xlu0
        %v200 = vpop.trf.xlu0
        %v201 = vpop.trf.xlu0
        %v202 = vpop.trf.xlu0
        %v203 = vpop.trf.xlu0
        %v204 = vpop.trf.xlu0
        %v205 = vpop.trf.xlu0
        %v206 = vpop.trf.xlu0
        %v207 = vpop.trf.xlu0
        %v208 = vpop.trf.xlu0
        %v209 = vpop.trf.xlu0
        %v210 = vpop.trf.xlu0
        %vm211 = vcmask 523264
        %v213 = vsel %vm211, %v195, 0
        %215 = vmatpush.msra.mxu0 0.0
        %216 = vmatpush.msra.mxu0 0.0
        %217 = vmatpush.msra.mxu0 0.0
        %218 = vmatpush.msra.mxu0 0.0
        %219 = vmatpush.msra.mxu0 0.0
        %220 = vmatpush.msra.mxu0 0.0
        %221 = vmatpush.msra.mxu0 0.0
        %222 = vmatpush.msra.mxu0 0.0
        %v223 = vand.u32 %v178, 4294901760
        %224 = vmatpush.msra.mxu0 %v223
        %v225 = vand.u32 %v177, 4294901760
        %226 = vmatpush.msra.mxu0 %v225
        %v227 = vand.u32 %v176, 4294901760
        %228 = vmatpush.msra.mxu0 %v227
        %v229 = vand.u32 %v175, 4294901760
        %230 = vmatpush.msra.mxu0 %v229
        %v231 = vand.u32 %v174, 4294901760
        %232 = vmatpush.msra.mxu0 %v231
        %v233 = vand.u32 %v173, 4294901760
        %234 = vmatpush.msra.mxu0 %v233
        %v235 = vand.u32 %v172, 4294901760
        %236 = vmatpush.msra.mxu0 %v235
        %v237 = vand.u32 %v171, 4294901760
        %238 = vmatpush.msra.mxu0 %v237
        %v239 = vand.u32 %v213, 4294901760
        %v240 = vsub.f32 %v213, %v239
        %v241 = vand.u32 %v240, 4294901760
        %v242 = vsub.f32 %v240, %v241
        %v243 = vand.u32 %v242, 4294901760
        %244 = vmatmul.f32.gmra.mxu0 %v243
        %v245 = vpop.f32.mrf.mxu0
        %v246 = vadd.f32 0.0, %v245
        %247 = vdwg.mxu0
        %248 = vmatpush.msra.mxu0 0.0
        %249 = vmatpush.msra.mxu0 0.0
        %250 = vmatpush.msra.mxu0 0.0
        %251 = vmatpush.msra.mxu0 0.0
        %252 = vmatpush.msra.mxu0 0.0
        %253 = vmatpush.msra.mxu0 0.0
        %254 = vmatpush.msra.mxu0 0.0
        %255 = vmatpush.msra.mxu0 0.0
        %v256 = vand.u32 %v178, 4294901760
        %v257 = vsub.f32 %v178, %v256
        %v258 = vand.u32 %v257, 4294901760
        %v259 = vsub.f32 %v257, %v258
        %v260 = vand.u32 %v259, 4294901760
        %261 = vmatpush.msra.mxu0 %v260
        %v262 = vand.u32 %v177, 4294901760
        %v263 = vsub.f32 %v177, %v262
        %v264 = vand.u32 %v263, 4294901760
        %v265 = vsub.f32 %v263, %v264
        %v266 = vand.u32 %v265, 4294901760
        %267 = vmatpush.msra.mxu0 %v266
        %v268 = vand.u32 %v176, 4294901760
        %v269 = vsub.f32 %v176, %v268
        %v270 = vand.u32 %v269, 4294901760
        %v271 = vsub.f32 %v269, %v270
        %v272 = vand.u32 %v271, 4294901760
        %273 = vmatpush.msra.mxu0 %v272
        %v274 = vand.u32 %v175, 4294901760
        %v275 = vsub.f32 %v175, %v274
        %v276 = vand.u32 %v275, 4294901760
        %v277 = vsub.f32 %v275, %v276
        %v278 = vand.u32 %v277, 4294901760
        %279 = vmatpush.msra.mxu0 %v278
        %v280 = vand.u32 %v174, 4294901760
        %v281 = vsub.f32 %v174, %v280
        %v282 = vand.u32 %v281, 4294901760
        %v283 = vsub.f32 %v281, %v282
        %v284 = vand.u32 %v283, 4294901760
        %285 = vmatpush.msra.mxu0 %v284
        %v286 = vand.u32 %v173, 4294901760
        %v287 = vsub.f32 %v173, %v286
        %v288 = vand.u32 %v287, 4294901760
        %v289 = vsub.f32 %v287, %v288
        %v290 = vand.u32 %v289, 4294901760
        %291 = vmatpush.msra.mxu0 %v290
        %v292 = vand.u32 %v172, 4294901760
        %v293 = vsub.f32 %v172, %v292
        %v294 = vand.u32 %v293, 4294901760
        %v295 = vsub.f32 %v293, %v294
        %v296 = vand.u32 %v295, 4294901760
        %297 = vmatpush.msra.mxu0 %v296
        %v298 = vand.u32 %v171, 4294901760
        %v299 = vsub.f32 %v171, %v298
        %v300 = vand.u32 %v299, 4294901760
        %v301 = vsub.f32 %v299, %v300
        %v302 = vand.u32 %v301, 4294901760
        %303 = vmatpush.msra.mxu0 %v302
        %v304 = vand.u32 %v213, 4294901760
        %305 = vmatmul.f32.gmra.mxu0 %v304
        %v306 = vpop.f32.mrf.mxu0
        %v307 = vadd.f32 %v246, %v306
        %308 = vdwg.mxu0
        %309 = vmatpush.msra.mxu0 0.0
        %310 = vmatpush.msra.mxu0 0.0
        %311 = vmatpush.msra.mxu0 0.0
        %312 = vmatpush.msra.mxu0 0.0
        %313 = vmatpush.msra.mxu0 0.0
        %314 = vmatpush.msra.mxu0 0.0
        %315 = vmatpush.msra.mxu0 0.0
        %316 = vmatpush.msra.mxu0 0.0
        %v317 = vand.u32 %v178, 4294901760
        %v318 = vsub.f32 %v178, %v317
        %319 = vmatpush.msra.mxu0 %v318
        %v320 = vand.u32 %v177, 4294901760
        %v321 = vsub.f32 %v177, %v320
        %322 = vmatpush.msra.mxu0 %v321
        %v323 = vand.u32 %v176, 4294901760
        %v324 = vsub.f32 %v176, %v323
        %325 = vmatpush.msra.mxu0 %v324
        %v326 = vand.u32 %v175, 4294901760
        %v327 = vsub.f32 %v175, %v326
        %328 = vmatpush.msra.mxu0 %v327
        %v329 = vand.u32 %v174, 4294901760
        %v330 = vsub.f32 %v174, %v329
        %331 = vmatpush.msra.mxu0 %v330
        %v332 = vand.u32 %v173, 4294901760
        %v333 = vsub.f32 %v173, %v332
        %334 = vmatpush.msra.mxu0 %v333
        %v335 = vand.u32 %v172, 4294901760
        %v336 = vsub.f32 %v172, %v335
        %337 = vmatpush.msra.mxu0 %v336
        %v338 = vand.u32 %v171, 4294901760
        %v339 = vsub.f32 %v171, %v338
        %340 = vmatpush.msra.mxu0 %v339
        %v341 = vand.u32 %v213, 4294901760
        %v342 = vsub.f32 %v213, %v341
        %343 = vmatmul.f32.gmra.mxu0 %v342
        %v344 = vpop.f32.mrf.mxu0
        %v345 = vadd.f32 %v307, %v344
        %346 = vdwg.mxu0
        %347 = vmatpush.msra.mxu0 0.0
        %348 = vmatpush.msra.mxu0 0.0
        %349 = vmatpush.msra.mxu0 0.0
        %350 = vmatpush.msra.mxu0 0.0
        %351 = vmatpush.msra.mxu0 0.0
        %352 = vmatpush.msra.mxu0 0.0
        %353 = vmatpush.msra.mxu0 0.0
        %354 = vmatpush.msra.mxu0 0.0
        %v355 = vand.u32 %v178, 4294901760
        %356 = vmatpush.msra.mxu0 %v355
        %v357 = vand.u32 %v177, 4294901760
        %358 = vmatpush.msra.mxu0 %v357
        %v359 = vand.u32 %v176, 4294901760
        %360 = vmatpush.msra.mxu0 %v359
        %v361 = vand.u32 %v175, 4294901760
        %362 = vmatpush.msra.mxu0 %v361
        %v363 = vand.u32 %v174, 4294901760
        %364 = vmatpush.msra.mxu0 %v363
        %v365 = vand.u32 %v173, 4294901760
        %366 = vmatpush.msra.mxu0 %v365
        %v367 = vand.u32 %v172, 4294901760
        %368 = vmatpush.msra.mxu0 %v367
        %v369 = vand.u32 %v171, 4294901760
        %370 = vmatpush.msra.mxu0 %v369
        %v371 = vand.u32 %v213, 4294901760
        %v372 = vsub.f32 %v213, %v371
        %v373 = vand.u32 %v372, 4294901760
        %374 = vmatmul.f32.gmra.mxu0 %v373
        %v375 = vpop.f32.mrf.mxu0
        %v376 = vadd.f32 %v345, %v375
        %377 = vdwg.mxu0
        %378 = vmatpush.msra.mxu0 0.0
        %379 = vmatpush.msra.mxu0 0.0
        %380 = vmatpush.msra.mxu0 0.0
        %381 = vmatpush.msra.mxu0 0.0
        %382 = vmatpush.msra.mxu0 0.0
        %383 = vmatpush.msra.mxu0 0.0
        %384 = vmatpush.msra.mxu0 0.0
        %385 = vmatpush.msra.mxu0 0.0
        %v386 = vand.u32 %v178, 4294901760
        %v387 = vsub.f32 %v178, %v386
        %v388 = vand.u32 %v387, 4294901760
        %389 = vmatpush.msra.mxu0 %v388
        %v390 = vand.u32 %v177, 4294901760
        %v391 = vsub.f32 %v177, %v390
        %v392 = vand.u32 %v391, 4294901760
        %393 = vmatpush.msra.mxu0 %v392
        %v394 = vand.u32 %v176, 4294901760
        %v395 = vsub.f32 %v176, %v394
        %v396 = vand.u32 %v395, 4294901760
        %397 = vmatpush.msra.mxu0 %v396
        %v398 = vand.u32 %v175, 4294901760
        %v399 = vsub.f32 %v175, %v398
        %v400 = vand.u32 %v399, 4294901760
        %401 = vmatpush.msra.mxu0 %v400
        %v402 = vand.u32 %v174, 4294901760
        %v403 = vsub.f32 %v174, %v402
        %v404 = vand.u32 %v403, 4294901760
        %405 = vmatpush.msra.mxu0 %v404
        %v406 = vand.u32 %v173, 4294901760
        %v407 = vsub.f32 %v173, %v406
        %v408 = vand.u32 %v407, 4294901760
        %409 = vmatpush.msra.mxu0 %v408
        %v410 = vand.u32 %v172, 4294901760
        %v411 = vsub.f32 %v172, %v410
        %v412 = vand.u32 %v411, 4294901760
        %413 = vmatpush.msra.mxu0 %v412
        %v414 = vand.u32 %v171, 4294901760
        %v415 = vsub.f32 %v171, %v414
        %v416 = vand.u32 %v415, 4294901760
        %417 = vmatpush.msra.mxu0 %v416
        %v418 = vand.u32 %v213, 4294901760
        %419 = vmatmul.f32.gmra.mxu0 %v418
        %v420 = vpop.f32.mrf.mxu0
        %v421 = vadd.f32 %v376, %v420
        %422 = vdwg.mxu0
        %423 = vmatpush.msra.mxu0 0.0
        %424 = vmatpush.msra.mxu0 0.0
        %425 = vmatpush.msra.mxu0 0.0
        %426 = vmatpush.msra.mxu0 0.0
        %427 = vmatpush.msra.mxu0 0.0
        %428 = vmatpush.msra.mxu0 0.0
        %429 = vmatpush.msra.mxu0 0.0
        %430 = vmatpush.msra.mxu0 0.0
        %v431 = vand.u32 %v178, 4294901760
        %432 = vmatpush.msra.mxu0 %v431
        %v433 = vand.u32 %v177, 4294901760
        %434 = vmatpush.msra.mxu0 %v433
        %v435 = vand.u32 %v176, 4294901760
        %436 = vmatpush.msra.mxu0 %v435
        %v437 = vand.u32 %v175, 4294901760
        %438 = vmatpush.msra.mxu0 %v437
        %v439 = vand.u32 %v174, 4294901760
        %440 = vmatpush.msra.mxu0 %v439
        %v441 = vand.u32 %v173, 4294901760
        %442 = vmatpush.msra.mxu0 %v441
        %v443 = vand.u32 %v172, 4294901760
        %444 = vmatpush.msra.mxu0 %v443
        %v445 = vand.u32 %v171, 4294901760
        %446 = vmatpush.msra.mxu0 %v445
        %v447 = vand.u32 %v213, 4294901760
        %448 = vmatmul.f32.gmra.mxu0 %v447
        %v449 = vpop.f32.mrf.mxu0
        %v450 = vadd.f32 %v421, %v449
        %451 = vdwg.mxu0
        %vm452 = vcmask 261120
        %453 = vst.msk [vmem:[%s132] sm:$0xff] %vm452, %v450
        %s454 = sand.u32 %s71, 1
        %s455 = scalar_lea.sflag [#allocation3], %s454
        %s456 = sand.u32 %s71, 1
        %s457 = smul.addr %s456, 8
        %s458 = scalar_lea.vmem [#allocation2], %s457
        // Predicated region
        $region29: #{tpu_custom_call.1} parent=27 // pred_check
          %p459 = pneg %p81
        $region30: #{tpu_custom_call.1} parent=27 // pred_check_branch
          %461 = sbr.rel (%p459) target = $region32
        $region31: #{tpu_custom_call.1} parent=27 // pred_region
          %463 = vsyncadd %s455, 0
          %s464 = smul.addr %s16, 8
          %s465 = scalar_lea.hbm %s2, %s464
          %s467 = sshll.u32 %s458, 4
          %s468 = int_to_ptr.vmem [resolvable:$true] %s467
          %s469 = sshll.u32 %s465, 4
          %s470 = int_to_ptr.hbm [resolvable:$true] %s469
          %472 = dma.vmem_to_hbm [thread:$0]  %s468, 128, %s470, %s455
        $region32: #{tpu_custom_call.1} parent=27 // pred_fallthru
          _
      $region28: #{tpu_custom_call.1} parent=5 // pred_fallthru
        _
      %p473 = scmp.le.s32.totalorder 2, %s11
      // Predicated region
      $region33: #{tpu_custom_call.1} parent=5 // pred_check
        %p474 = pneg %p473
      $region34: #{tpu_custom_call.1} parent=5 // pred_check_branch
        %476 = sbr.rel (%p474) target = $region36
      $region35: #{tpu_custom_call.1} parent=5 // pred_region
        %s477 = ssub.s32 %s11, 2
        // Predicated region
        $region37: #{tpu_custom_call.1} parent=35 // pred_check
          %p478 = pneg %p87
        $region38: #{tpu_custom_call.1} parent=35 // pred_check_branch
          %480 = sbr.rel (%p478) target = $region40
        $region39: #{tpu_custom_call.1} parent=35 // pred_region
          %s481 = sand.u32 %s72, 1
          %s482 = scalar_lea.sflag [#allocation3], %s481
          %s483 = sand.u32 %s72, 1
          %s484 = smul.addr %s483, 8
          %s485 = scalar_lea.vmem [#allocation2], %s484
          %487 = dma.done %s482, 128
        $region40: #{tpu_custom_call.1} parent=35 // pred_fallthru
          _
      $region36: #{tpu_custom_call.1} parent=5 // pred_fallthru
        _
    $region6: #{tpu_custom_call.1} parent=1 // loop_footer
      %s15 = sadd.s32 1, %s11
    $region7: #{tpu_custom_call.1} parent=1 // loop_footer_branch
      %10 = sbr.rel target = $region3
    $region8: #{tpu_custom_call.1} parent=1 // loop_exit
      _
    %488 = vsyncpa [#allocation3], 1
    %s489 = scalar_lea.sflag [#allocation3], 1
    %490 = vsyncpa %s489, 1

</llo_original>
